<compile_context>
chip_gen: v6e
topology: v6e:2x2x1
jax: 0.10.0
libtpu: 0.0.40
codegen_flags: <defaults>
</compile_context>

<pallas_src>
import functools

import jax
import jax.numpy as jnp
from jax.experimental import pallas as pl
from jax.experimental.pallas import tpu as pltpu

LN_EPS = 1e-6  # timm.layers.LayerNorm default


def _layernorm(x, w, b):
    mu = jnp.mean(x, axis=-1, keepdims=True)
    xc = x - mu
    var = jnp.mean(xc * xc, axis=-1, keepdims=True)
    inv = jax.lax.rsqrt(var + LN_EPS)
    return xc * inv * w + b


# ---------------------------------------------------------------------------
# Kernel 1: fused K/V projection, hoisted out of the per-query-tile kernel.
# ---------------------------------------------------------------------------
def _kv_proj_kernel(kv_ref, wkv_ref, bv_ref, k_out_ref, v_out_ref,
                    *, num_heads, head_dim):
    f32 = jnp.float32
    c = num_heads * head_dim
    kv_b = kv_ref[0]                                               # (TM, C) bf16
    tm = kv_b.shape[0]
    kvp = jnp.dot(kv_b, wkv_ref[...], preferred_element_type=f32)  # (TM, 2C)
    k = kvp[:, :c]                                                 # k_proj has no bias
    v = kvp[:, c:] + bv_ref[0]
    kh = pltpu.einshape("mhd->hmd", k.reshape(tm, num_heads, head_dim))
    vh = pltpu.einshape("mhd->hmd", v.reshape(tm, num_heads, head_dim))
    k_out_ref[0] = kh.astype(k_out_ref.dtype)
    v_out_ref[0] = vh.astype(v_out_ref.dtype)


# ---------------------------------------------------------------------------
# Kernel 2: LN1 -> q-proj -> flash cross-attention over kv tiles -> out-proj
#           -> residual -> LN2 -> MLP -> residual.
# ---------------------------------------------------------------------------
def _block_kernel(q_ref, k_ref, v_ref,
                  ln1w_ref, ln1b_ref, wq_ref, bq_ref,
                  wp_ref, bp_ref,
                  ln2w_ref, ln2b_ref,
                  w1_ref, b1_ref, w2_ref, b2_ref,
                  out_ref,
                  qh_s, m_s, l_s, acc_s,
                  *, num_heads, head_dim, kv_len, kv_tile, mask_kv):
    f32 = jnp.float32
    bf16 = jnp.bfloat16
    mi = pl.program_id(2)

    # ---- prologue: once per query tile (first kv step) ----
    @pl.when(mi == 0)
    def _():
        x = q_ref[0].astype(f32)                                   # (TN, C)
        xn = _layernorm(x, ln1w_ref[0], ln1b_ref[0])
        q = jnp.dot(xn.astype(bf16), wq_ref[...],
                    preferred_element_type=f32) + bq_ref[0]
        q = q * (head_dim ** -0.5)        # scale folded into q, not into scores
        tn = q.shape[0]
        qh = pltpu.einshape("nhd->hnd", q.reshape(tn, num_heads, head_dim))
        qh_s[...] = qh.astype(bf16)                                # (H, TN, hd)
        m_s[...] = jnp.full(m_s.shape, -jnp.inf, dtype=m_s.dtype)
        l_s[...] = jnp.zeros(l_s.shape, dtype=l_s.dtype)
        acc_s[...] = jnp.zeros(acc_s.shape, dtype=acc_s.dtype)

    # ---- flash-attention (online softmax) update for this kv tile ----
    kh = k_ref[0]                                                  # (H, TM, hd) bf16
    vh = v_ref[0]
    s = jnp.einsum("hnd,hmd->hnm", qh_s[...], kh,
                   preferred_element_type=f32)                     # (H, TN, TM)
    if mask_kv:  # static flag: only generated when kv_len % kv_tile != 0
        kpos = mi * kv_tile + jax.lax.broadcasted_iota(jnp.int32, s.shape, 2)
        s = jnp.where(kpos < kv_len, s, -jnp.inf)
    m_new = jnp.maximum(m_s[...], jnp.max(s, axis=-1, keepdims=True))
    alpha = jnp.exp(m_s[...] - m_new)
    p = jnp.exp(s - m_new)
    l_s[...] = alpha * l_s[...] + jnp.sum(p, axis=-1, keepdims=True)
    acc_s[...] = alpha * acc_s[...] + jnp.einsum(
        "hnm,hmd->hnd", p.astype(bf16), vh, preferred_element_type=f32)
    m_s[...] = m_new

    # ---- epilogue: last kv step ----
    @pl.when(mi == pl.num_programs(2) - 1)
    def _():
        c = num_heads * head_dim
        o = acc_s[...] * pl.reciprocal(l_s[...], approx=True)      # (H, TN, hd)
        tn = o.shape[1]
        attn = pltpu.einshape("hnd->nhd", o).reshape(tn, c)        # (TN, C)
        attn = jnp.dot(attn.astype(bf16), wp_ref[...],
                       preferred_element_type=f32) + bp_ref[0]
        x = q_ref[0].astype(f32) + attn                            # residual 1
        xn2 = _layernorm(x, ln2w_ref[0], ln2b_ref[0])
        h1 = jnp.dot(xn2.astype(bf16), w1_ref[...],
                     preferred_element_type=f32) + b1_ref[0]
        # tanh GELU routes through the EUP slot (idle in the MLP phase); the
        # exact erf form is a long VALU polynomial.  Accepted inference delta.
        h1 = jax.nn.gelu(h1, approximate=True)
        h2 = jnp.dot(h1.astype(bf16), w2_ref[...],
                     preferred_element_type=f32) + b2_ref[0]
        out_ref[0] = (x + h2).astype(out_ref.dtype)                # residual 2


# ---------------------------------------------------------------------------
# Wrapper
# ---------------------------------------------------------------------------
def _round_tile(req, total, pref=128):
    """Tile size <= total; multiples of `pref` (MXU-filling, lane-dense) at
    realistic sizes, 8-granular fallback for tiny test shapes."""
    if req >= total:
        return total
    g = pref if req >= pref else 8
    return max(g, (req // g) * g)


def _vmem_limit_bytes():
    # ~85% of per-core VMEM: ~108 MiB on v5e/v6e, ~54 MiB on v7x.
    try:
        cap = pltpu.get_tpu_info().vmem_capacity_bytes
    except Exception:
        cap = 64 * 1024 * 1024
    return max(32 * 1024 * 1024, int(cap * 0.85))


def eva_cross_attention_block(query, key_value, params, *, num_heads,
                              q_tile=256, kv_tile=512):
    B, N, C = query.shape
    _, M, _ = key_value.shape
    assert C % num_heads == 0
    head_dim = C // num_heads
    hidden = params["w1"].shape[1]
    bf16 = jnp.bfloat16
    vmem_limit = _vmem_limit_bytes()

    # -------- Kernel 1: K/V projection (once per batch, not per q-tile) -----
    TMp = _round_tile(kv_tile, M)
    wkv = jnp.concatenate([params["wk"], params["wv"]], axis=1).astype(bf16)
    kv_bf16 = key_value.astype(bf16)        # bf16 at the boundary: half the DMA

    kv_out = jax.ShapeDtypeStruct((B, num_heads, M, head_dim), bf16)
    k_heads, v_heads = pl.pallas_call(
        functools.partial(_kv_proj_kernel, num_heads=num_heads,
                          head_dim=head_dim),
        out_shape=(kv_out, kv_out),
        grid=(B, pl.cdiv(M, TMp)),
        in_specs=[
            pl.BlockSpec((1, TMp, C), lambda b, m: (b, m, 0)),
            pl.BlockSpec((C, 2 * C), lambda b, m: (0, 0)),
            pl.BlockSpec((1, C), lambda b, m: (0, 0)),
        ],
        out_specs=(
            pl.BlockSpec((1, num_heads, TMp, head_dim),
                         lambda b, m: (b, 0, m, 0)),
            pl.BlockSpec((1, num_heads, TMp, head_dim),
                         lambda b, m: (b, 0, m, 0)),
        ),
        compiler_params=pltpu.CompilerParams(
            dimension_semantics=("parallel", "parallel"),
            vmem_limit_bytes=vmem_limit),
    )(kv_bf16, wkv, params["bv"])

    # -------- Kernel 2: the transformer block --------------------------------
    TN = _round_tile(q_tile, N)
    if B == 1 and TN == N and N >= 16 and (N // 2) % 8 == 0:
        TN = N // 2          # expose >=2 parallel query tiles for megacore (v7x)
    TM = _round_tile(kv_tile, M)
    mask_kv = (M % TM) != 0
    grid = (B, pl.cdiv(N, TN), pl.cdiv(M, TM))
    # Note: if N % TN != 0, padded query rows compute garbage but every op is
    # row-independent along the token axis, so valid rows are unaffected and
    # out-of-range rows are dropped on writeback.  Padded kv rows are masked.

    kernel = functools.partial(
        _block_kernel, num_heads=num_heads, head_dim=head_dim,
        kv_len=M, kv_tile=TM, mask_kv=mask_kv)

    def const_spec(shape):
        # Grid-invariant operand: constant block index -> fetched once, resident.
        return pl.BlockSpec(shape, lambda b, i, m: (0,) * len(shape))

    in_specs = [
        pl.BlockSpec((1, TN, C), lambda b, i, m: (b, i, 0)),            # query
        pl.BlockSpec((1, num_heads, TM, head_dim),
                     lambda b, i, m: (b, 0, m, 0)),                     # k heads
        pl.BlockSpec((1, num_heads, TM, head_dim),
                     lambda b, i, m: (b, 0, m, 0)),                     # v heads
        const_spec((1, C)), const_spec((1, C)),                         # ln1 w, b
        const_spec((C, C)), const_spec((1, C)),                         # q proj W, b
        const_spec((C, C)), const_spec((1, C)),                         # out proj W, b
        const_spec((1, C)), const_spec((1, C)),                         # ln2 w, b
        const_spec((C, hidden)), const_spec((1, hidden)),               # fc1 W, b
        const_spec((hidden, C)), const_spec((1, C)),                    # fc2 W, b
    ]

    return pl.pallas_call(
        kernel,
        out_shape=jax.ShapeDtypeStruct((B, N, C), query.dtype),
        grid=grid,
        in_specs=in_specs,
        out_specs=pl.BlockSpec((1, TN, C), lambda b, i, m: (b, i, 0)),
        scratch_shapes=[
            pltpu.VMEM((num_heads, TN, head_dim), bf16),          # q heads (scaled)
            pltpu.VMEM((num_heads, TN, 1), jnp.float32),          # running max
            pltpu.VMEM((num_heads, TN, 1), jnp.float32),          # running sum
            pltpu.VMEM((num_heads, TN, head_dim), jnp.float32),   # output accum
        ],
        compiler_params=pltpu.CompilerParams(
            dimension_semantics=("parallel", "parallel", "arbitrary"),
            vmem_limit_bytes=vmem_limit),
    )(
        query, k_heads, v_heads,
        params["ln1w"], params["ln1b"],
        params["wq"].astype(bf16), params["bq"],
        params["wp"].astype(bf16), params["bp"],
        params["ln2w"], params["ln2b"],
        params["w1"].astype(bf16), params["b1"],
        params["w2"].astype(bf16), params["b2"],
    )


def _reference(query, key_value, params, *, num_heads):
    """Pure-JAX fp32 reference of the same forward pass (module semantics)."""
    B, N, C = query.shape
    _, M, _ = key_value.shape
    hd = C // num_heads

    def ln(x, w, b):
        mu = x.mean(-1, keepdims=True)
        var = ((x - mu) ** 2).mean(-1, keepdims=True)
        return (x - mu) / jnp.sqrt(var + LN_EPS) * w[0] + b[0]

    xn = ln(query, params["ln1w"], params["ln1b"])
    q = xn @ params["wq"] + params["bq"][0]
    k = key_value @ params["wk"]
    v = key_value @ params["wv"] + params["bv"][0]
    q = q.reshape(B, N, num_heads, hd).transpose(0, 2, 1, 3)
    k = k.reshape(B, M, num_heads, hd).transpose(0, 2, 1, 3)
    v = v.reshape(B, M, num_heads, hd).transpose(0, 2, 1, 3)
    s = jnp.einsum("bhnd,bhmd->bhnm", q, k) * (hd ** -0.5)
    p = jax.nn.softmax(s, axis=-1)
    o = jnp.einsum("bhnm,bhmd->bhnd", p, v).transpose(0, 2, 1, 3).reshape(B, N, C)
    o = o @ params["wp"] + params["bp"][0]
    x = query + o
    xn2 = ln(x, params["ln2w"], params["ln2b"])
    h = jax.nn.gelu(xn2 @ params["w1"] + params["b1"][0], approximate=False)
    return x + (h @ params["w2"] + params["b2"][0])


if __name__ == "__main__":
    B, N, M = 2, 16, 16          # batch, query tokens, key/value tokens
    dim, num_heads = 32, 4       # C, heads -> head_dim = 8
    hidden = int(dim * 4.0)      # mlp_ratio = 4.0

    key = jax.random.PRNGKey(0)
    keys = jax.random.split(key, 12)

    query = jax.random.normal(keys[0], (B, N, dim), jnp.float32)
    key_value = jax.random.normal(keys[1], (B, M, dim), jnp.float32)

    s = 0.02
    params = {
        "ln1w": jnp.ones((1, dim), jnp.float32),
        "ln1b": jnp.zeros((1, dim), jnp.float32),
        "wq": s * jax.random.normal(keys[2], (dim, dim), jnp.float32),
        "bq": s * jax.random.normal(keys[3], (1, dim), jnp.float32),
        "wk": s * jax.random.normal(keys[4], (dim, dim), jnp.float32),
        "wv": s * jax.random.normal(keys[5], (dim, dim), jnp.float32),
        "bv": s * jax.random.normal(keys[6], (1, dim), jnp.float32),
        "wp": s * jax.random.normal(keys[7], (dim, dim), jnp.float32),
        "bp": s * jax.random.normal(keys[8], (1, dim), jnp.float32),
        "ln2w": jnp.ones((1, dim), jnp.float32),
        "ln2b": jnp.zeros((1, dim), jnp.float32),
        "w1": s * jax.random.normal(keys[9], (dim, hidden), jnp.float32),
        "b1": jnp.zeros((1, hidden), jnp.float32),
        "w2": s * jax.random.normal(keys[10], (hidden, dim), jnp.float32),
        "b2": jnp.zeros((1, dim), jnp.float32),
    }

    # q_tile=8, kv_tile=8 -> main grid (2, 2, 2): exercises the tiled query
    # axis, the flash (online-softmax) kv axis, and the hoisted K/V projection.
    out = eva_cross_attention_block(query, key_value, params,
                                    num_heads=num_heads, q_tile=8, kv_tile=8)
    out = jax.block_until_ready(out)

    ref = _reference(query, key_value, params, num_heads=num_heads)
    assert out.shape == (B, N, dim)
    # bf16 matmul inputs + EUP approx reciprocal + tanh GELU => loose tolerance.
    assert jnp.allclose(out, ref, atol=2e-3, rtol=2e-3), "mismatch vs JAX reference"

    print("KERNEL_OK")
</pallas_src>

<mosaic_0001>
module attributes {stable_mosaic.version = 11 : i64} {
  func.func @_kv_proj_kernel(%arg0: i32, %arg1: i32, %arg2: memref<1x8x32xbf16, #tpu.memory_space<vmem>>, %arg3: memref<32x64xbf16, #tpu.memory_space<vmem>>, %arg4: memref<1x32xf32, #tpu.memory_space<vmem>>, %arg5: memref<1x4x8x8xbf16, #tpu.memory_space<vmem>>, %arg6: memref<1x4x8x8xbf16, #tpu.memory_space<vmem>>) attributes {dimension_semantics = [#tpu.dimension_semantics<parallel>, #tpu.dimension_semantics<parallel>], iteration_bounds = array<i64: 2, 2>, scalar_prefetch = 0 : i64, scratch_operands = 0 : i64, tpu.core_type = #tpu.core_type<tc>, window_params = [{transform_indices = @transform_0, window_bounds = array<i64: 1, 8, 32>}, {pipeline_mode = #tpu.pipeline_mode<synchronous>, transform_indices = @transform_1, window_bounds = array<i64: 32, 64>}, {pipeline_mode = #tpu.pipeline_mode<synchronous>, transform_indices = @transform_2, window_bounds = array<i64: 1, 32>}, {transform_indices = @transform_3, window_bounds = array<i64: 1, 4, 8, 8>}, {transform_indices = @transform_4, window_bounds = array<i64: 1, 4, 8, 8>}]} {
    %c0 = arith.constant 0 : index
    %c0_0 = arith.constant 0 : index
    %c0_1 = arith.constant 0 : index
    %0 = vector.load %arg2[%c0, %c0_0, %c0_1] : memref<1x8x32xbf16, #tpu.memory_space<vmem>>, vector<1x8x32xbf16>
    %1 = vector.shape_cast %0 : vector<1x8x32xbf16> to vector<8x32xbf16>
    %c0_2 = arith.constant 0 : index
    %c0_3 = arith.constant 0 : index
    %2 = vector.load %arg3[%c0_2, %c0_3] : memref<32x64xbf16, #tpu.memory_space<vmem>>, vector<32x64xbf16>
    %cst = arith.constant dense<0.000000e+00> : vector<8x64xf32>
    %3 = tpu.matmul %1, %2, %cst {dimension_numbers = #tpu.dot_dimension_numbers<[1], [0], [0], [1], [0, 0, 1, 1], [], []>} : vector<8x32xbf16>, vector<32x64xbf16>, vector<8x64xf32> -> vector<8x64xf32>
    %4 = vector.extract_strided_slice %3 {offsets = [0, 0], sizes = [8, 32], strides = [1, 1]} : vector<8x64xf32> to vector<8x32xf32>
    %5 = vector.extract_strided_slice %3 {offsets = [0, 32], sizes = [8, 32], strides = [1, 1]} : vector<8x64xf32> to vector<8x32xf32>
    %c0_4 = arith.constant 0 : index
    %c0_5 = arith.constant 0 : index
    %6 = vector.load %arg4[%c0_4, %c0_5] : memref<1x32xf32, #tpu.memory_space<vmem>>, vector<1x32xf32>
    %7 = vector.shape_cast %6 : vector<1x32xf32> to vector<32xf32>
    %8 = vector.shape_cast %7 : vector<32xf32> to vector<1x32xf32>
    %9 = vector.broadcast %8 : vector<1x32xf32> to vector<8x32xf32>
    %10 = arith.addf %5, %9 : vector<8x32xf32>
    %11 = vector.shape_cast %4 : vector<8x32xf32> to vector<8x4x8xf32>
    %12 = tpu.transpose %11, [1, 0, 2] : vector<8x4x8xf32> -> vector<4x8x8xf32>
    %13 = vector.shape_cast %10 : vector<8x32xf32> to vector<8x4x8xf32>
    %14 = tpu.transpose %13, [1, 0, 2] : vector<8x4x8xf32> -> vector<4x8x8xf32>
    %15 = arith.truncf %12 : vector<4x8x8xf32> to vector<4x8x8xbf16>
    %c0_6 = arith.constant 0 : index
    %c0_7 = arith.constant 0 : index
    %c0_8 = arith.constant 0 : index
    %c0_9 = arith.constant 0 : index
    %16 = vector.load %arg5[%c0_6, %c0_7, %c0_8, %c0_9] : memref<1x4x8x8xbf16, #tpu.memory_space<vmem>>, vector<1x4x8x8xbf16>
    %17 = vector.shape_cast %16 : vector<1x4x8x8xbf16> to vector<4x8x8xbf16>
    %18 = vector.shape_cast %15 : vector<4x8x8xbf16> to vector<1x4x8x8xbf16>
    tpu.vector_store %arg5[%c0_6, %c0_7, %c0_8, %c0_9], %18 {strides = array<i32>} : memref<1x4x8x8xbf16, #tpu.memory_space<vmem>>, vector<1x4x8x8xbf16>,
    %19 = arith.truncf %14 : vector<4x8x8xf32> to vector<4x8x8xbf16>
    %c0_10 = arith.constant 0 : index
    %c0_11 = arith.constant 0 : index
    %c0_12 = arith.constant 0 : index
    %c0_13 = arith.constant 0 : index
    %20 = vector.load %arg6[%c0_10, %c0_11, %c0_12, %c0_13] : memref<1x4x8x8xbf16, #tpu.memory_space<vmem>>, vector<1x4x8x8xbf16>
    %21 = vector.shape_cast %20 : vector<1x4x8x8xbf16> to vector<4x8x8xbf16>
    %22 = vector.shape_cast %19 : vector<4x8x8xbf16> to vector<1x4x8x8xbf16>
    tpu.vector_store %arg6[%c0_10, %c0_11, %c0_12, %c0_13], %22 {strides = array<i32>} : memref<1x4x8x8xbf16, #tpu.memory_space<vmem>>, vector<1x4x8x8xbf16>,
    return
  }
  func.func @transform_0(%arg0: i32, %arg1: i32) -> (i32, i32, i32) {
    %c0_i32 = arith.constant 0 : i32
    %c0_i32_0 = arith.constant 0 : i32
    return %arg0, %arg1, %c0_i32 : i32, i32, i32
  }
  func.func @transform_1(%arg0: i32, %arg1: i32) -> (i32, i32) {
    %c0_i32 = arith.constant 0 : i32
    %c0_i32_0 = arith.constant 0 : i32
    %c0_i32_1 = arith.constant 0 : i32
    return %c0_i32, %c0_i32_0 : i32, i32
  }
  func.func @transform_2(%arg0: i32, %arg1: i32) -> (i32, i32) {
    %c0_i32 = arith.constant 0 : i32
    %c0_i32_0 = arith.constant 0 : i32
    %c0_i32_1 = arith.constant 0 : i32
    return %c0_i32, %c0_i32_0 : i32, i32
  }
  func.func @transform_3(%arg0: i32, %arg1: i32) -> (i32, i32, i32, i32) {
    %c0_i32 = arith.constant 0 : i32
    %c0_i32_0 = arith.constant 0 : i32
    %c0_i32_1 = arith.constant 0 : i32
    return %arg0, %c0_i32, %arg1, %c0_i32_0 : i32, i32, i32, i32
  }
  func.func @transform_4(%arg0: i32, %arg1: i32) -> (i32, i32, i32, i32) {
    %c0_i32 = arith.constant 0 : i32
    %c0_i32_0 = arith.constant 0 : i32
    %c0_i32_1 = arith.constant 0 : i32
    return %arg0, %c0_i32, %arg1, %c0_i32_0 : i32, i32, i32, i32
  }
}

</mosaic_0001>

<llo_original>
// kernel: tpu_custom_call.1
$region0: #{tpu_custom_call.1}
  #allocation0 [shape = 'u32[]', space=smem, size = 0x4, offset = 0x4, fixed_abs, tag = 'smem constant byte address 0x4 - core index']
  #allocation1 [shape = 'u32[144,128]{1,0:T(1,128)}', space=vmem, size = 0x12000, scoped, tag = 'internal scratch']
  %s0 = inlined_call_operand.hbm [shape: bf16[2,16,32], index: 0, kind: input, shape index: {}]
  %s1 = inlined_call_operand.hbm [shape: bf16[32,64], index: 1, kind: input, shape index: {}]
  %s2 = inlined_call_operand.vmem [shape: f32[1,32], index: 2, kind: input, shape index: {}]
  %s3 = inlined_call_operand.vmem [shape: bf16[2,4,16,8], index: 3, kind: output, shape index: {0}]
  %s4 = inlined_call_operand.vmem [shape: bf16[2,4,16,8], index: 4, kind: output, shape index: {1}]
  %5 = xla_tuple %s3, %s4
  %s6 = sld [smem:[#allocation0]]
  $region135: #{tpu_custom_call.1} parent=0
    _
  %s8 = ssub.s32 1, %s6
  %s9 = scalar_select 0, %s8, %s6
  $region1: #{tpu_custom_call.1} parent=0
    #allocation2 [shape = 'u8[4096]{0}', space=vmem, size = 0x1000, scoped, tag = 'input window, operand 0']
    #allocation3 [shape = 's32[2]{0}', space=sflag, size = 0x8, scoped, tag = 'scoped memory for tpu_custom_call.1']
    #allocation4 [shape = 'u8[8192]{0}', space=vmem, size = 0x2000, scoped, tag = 'input window, operand 1, single buffered']
    #allocation5 [shape = 's32[1]{0}', space=sflag, size = 0x4, scoped, tag = 'scoped memory for tpu_custom_call.1']
    #allocation6 [shape = 'u8[16384]{0}', space=vmem, size = 0x4000, scoped, tag = 'output window, operand 0']
    #allocation7 [shape = 'u8[16384]{0}', space=vmem, size = 0x4000, scoped, tag = 'output window, operand 1']
    %10 = vsyncpa [#allocation3], 0
    %s11 = scalar_lea.sflag [#allocation3], 1
    %12 = vsyncpa %s11, 0
    %13 = vsyncpa [#allocation5], 0
    loop: start=0, step=1, limit=6
    $region2: #{tpu_custom_call.1} parent=1 // loop_pre_header
      _
    $region3: #{tpu_custom_call.1} parent=1 // loop_header
      %s15 = sphi 0, %s19
      %p16 = scmp.ge.s32.totalorder %s15, 6
      %s22 = sphi 0, %s34
      %s23 = sphi 0, %s30
      %s24 = sphi 0, %s22
      %s25 = sphi 0, %s23
      %s26 = sphi 0, %s24
      %s27 = sphi 0, %s25
      %s39 = sphi 0, %s41
      %s42 = sphi 0, %s39
      %s43 = sphi 0, %s42
      %s59 = sphi 0, %s43
      %s63 = sphi 0, %s63
      %s65 = sphi 0, %s63
      %s66 = sphi 0, %s65
      %s80 = sphi 0, %s66
      %s84 = sphi 0, %s84
      %s86 = sphi 0, %s84
      %s87 = sphi 0, %s86
      %s101 = sphi 0, %s87
      %s109 = sphi 0, %s111
      %s112 = sphi 0, %s109
      %s113 = sphi 0, %s112
      %s129 = sphi 0, %s113
      %s137 = sphi 0, %s139
      %s140 = sphi 0, %s137
      %s141 = sphi 0, %s140
      %s157 = sphi 0, %s141
    $region4: #{tpu_custom_call.1} parent=1 // loop_header_branch
      %18 = sbr.rel (%p16) target = $region8
    $region5: #{tpu_custom_call.1} parent=1 // loop_body
      %s20 = ssub.s32 %s15, 1
      %s21 = ssub.s32 %s15, 2
      %s28 = sadd.s32 1, %s23
      %p29 = scmp.ge.s32.totalorder %s28, 2
      %s30 = scalar_select %p29, 0, %s28
      %s31 = sadd.s32 1, %s22
      %s32 = scalar_select %p29, %s31, %s22
      %p33 = scmp.ge.s32.totalorder %s32, 2
      %s34 = scalar_select %p33, 0, %s32
      %s35 = ssub.s32 %s22, %s34
      %s36 = ssub.s32 %s23, %s30
      %s37 = sor.u32 %s35, %s36
      %p38 = scmp.eq.s32.totalorder %s37, 0
      %s40 = sadd.s32 %s39, 1
      %s41 = scalar_select %p38, %s39, %s40
      %p44 = pneg %p38
      %p45 = scmp.eq.s32.totalorder %s15, 3
      %p46 = por %p44, %p45
      %p47 = scmp.ne.s32.totalorder %s39, %s42
      %p48 = scmp.eq.s32.totalorder %s15, 0
      %p49 = por %p47, %p48
      %p50 = scmp.ne.s32.totalorder %s39, %s42
      %p51 = scmp.eq.s32.totalorder %s20, 3
      %p52 = por %p50, %p51
      %p53 = scmp.ne.s32.totalorder %s42, %s43
      %p54 = scmp.eq.s32.totalorder %s20, 0
      %p55 = por %p53, %p54
      %p56 = scmp.ne.s32.totalorder %s42, %s43
      %p57 = scmp.eq.s32.totalorder %s21, 3
      %p58 = por %p56, %p57
      %p60 = scmp.ne.s32.totalorder %s43, %s59
      %p61 = scmp.eq.s32.totalorder %s21, 0
      %p62 = por %p60, %p61
      %s64 = sadd.s32 %s63, 1
      %p67 = scmp.eq.s32.totalorder %s15, 3
      %p68 = scmp.ne.s32.totalorder %s63, %s65
      %p69 = scmp.eq.s32.totalorder %s15, 0
      %p70 = por %p68, %p69
      %p71 = scmp.ne.s32.totalorder %s63, %s65
      %p72 = scmp.eq.s32.totalorder %s20, 3
      %p73 = por %p71, %p72
      %p74 = scmp.ne.s32.totalorder %s65, %s66
      %p75 = scmp.eq.s32.totalorder %s20, 0
      %p76 = por %p74, %p75
      %p77 = scmp.ne.s32.totalorder %s65, %s66
      %p78 = scmp.eq.s32.totalorder %s21, 3
      %p79 = por %p77, %p78
      %p81 = scmp.ne.s32.totalorder %s66, %s80
      %p82 = scmp.eq.s32.totalorder %s21, 0
      %p83 = por %p81, %p82
      %s85 = sadd.s32 %s84, 1
      %p88 = scmp.eq.s32.totalorder %s15, 3
      %p89 = scmp.ne.s32.totalorder %s84, %s86
      %p90 = scmp.eq.s32.totalorder %s15, 0
      %p91 = por %p89, %p90
      %p92 = scmp.ne.s32.totalorder %s84, %s86
      %p93 = scmp.eq.s32.totalorder %s20, 3
      %p94 = por %p92, %p93
      %p95 = scmp.ne.s32.totalorder %s86, %s87
      %p96 = scmp.eq.s32.totalorder %s20, 0
      %p97 = por %p95, %p96
      %p98 = scmp.ne.s32.totalorder %s86, %s87
      %p99 = scmp.eq.s32.totalorder %s21, 3
      %p100 = por %p98, %p99
      %p102 = scmp.ne.s32.totalorder %s87, %s101
      %p103 = scmp.eq.s32.totalorder %s21, 0
      %p104 = por %p102, %p103
      %s105 = ssub.s32 %s22, %s34
      %s106 = ssub.s32 %s23, %s30
      %s107 = sor.u32 %s105, %s106
      %p108 = scmp.eq.s32.totalorder %s107, 0
      %s110 = sadd.s32 %s109, 1
      %s111 = scalar_select %p108, %s109, %s110
      %p114 = pneg %p108
      %p115 = scmp.eq.s32.totalorder %s15, 3
      %p116 = por %p114, %p115
      %p117 = scmp.ne.s32.totalorder %s109, %s112
      %p118 = scmp.eq.s32.totalorder %s15, 0
      %p119 = por %p117, %p118
      %p120 = scmp.ne.s32.totalorder %s109, %s112
      %p121 = scmp.eq.s32.totalorder %s20, 3
      %p122 = por %p120, %p121
      %p123 = scmp.ne.s32.totalorder %s112, %s113
      %p124 = scmp.eq.s32.totalorder %s20, 0
      %p125 = por %p123, %p124
      %p126 = scmp.ne.s32.totalorder %s112, %s113
      %p127 = scmp.eq.s32.totalorder %s21, 3
      %p128 = por %p126, %p127
      %p130 = scmp.ne.s32.totalorder %s113, %s129
      %p131 = scmp.eq.s32.totalorder %s21, 0
      %p132 = por %p130, %p131
      %s133 = ssub.s32 %s22, %s34
      %s134 = ssub.s32 %s23, %s30
      %s135 = sor.u32 %s133, %s134
      %p136 = scmp.eq.s32.totalorder %s135, 0
      %s138 = sadd.s32 %s137, 1
      %s139 = scalar_select %p136, %s137, %s138
      %p142 = pneg %p136
      %p143 = scmp.eq.s32.totalorder %s15, 3
      %p144 = por %p142, %p143
      %p145 = scmp.ne.s32.totalorder %s137, %s140
      %p146 = scmp.eq.s32.totalorder %s15, 0
      %p147 = por %p145, %p146
      %p148 = scmp.ne.s32.totalorder %s137, %s140
      %p149 = scmp.eq.s32.totalorder %s20, 3
      %p150 = por %p148, %p149
      %p151 = scmp.ne.s32.totalorder %s140, %s141
      %p152 = scmp.eq.s32.totalorder %s20, 0
      %p153 = por %p151, %p152
      %p154 = scmp.ne.s32.totalorder %s140, %s141
      %p155 = scmp.eq.s32.totalorder %s21, 3
      %p156 = por %p154, %p155
      %p158 = scmp.ne.s32.totalorder %s141, %s157
      %p159 = scmp.eq.s32.totalorder %s21, 0
      %p160 = por %p158, %p159
      %p161 = scmp.le.s32.totalorder 1, %s15
      %p162 = scmp.lt.s32.totalorder %s15, 5
      %p163 = pnand %p161, %p162
      %p164 = pneg %p163
      // Predicated region
      $region9: #{tpu_custom_call.1} parent=5 // pred_check
        _
      $region10: #{tpu_custom_call.1} parent=5 // pred_check_branch
        %166 = sbr.rel (%p163) target = $region12
      $region11: #{tpu_custom_call.1} parent=5 // pred_region
        %s167 = ssub.s32 %s15, 1
        // Predicated region
        $region13: #{tpu_custom_call.1} parent=11 // pred_check
          %p168 = pneg %p76
        $region14: #{tpu_custom_call.1} parent=11 // pred_check_branch
          %170 = sbr.rel (%p168) target = $region16
        $region15: #{tpu_custom_call.1} parent=11 // pred_region
          %s172 = ssub.s32 256, 256
          %173 = vsyncadd [#allocation5], %s172
          %s174 = sshll.u32 [#allocation4], 4
          %s175 = int_to_ptr.vmem [resolvable:$true] %s174
          %180 = dma.hbm_to_vmem [thread:$0]  %s1, 256, %s175, [#allocation5], 64, 64, 4
        $region16: #{tpu_custom_call.1} parent=11 // pred_fallthru
          _
        // Predicated region
        $region17: #{tpu_custom_call.1} parent=11 // pred_check
          %p181 = pneg %p97
        $region18: #{tpu_custom_call.1} parent=11 // pred_check_branch
          %183 = sbr.rel (%p181) target = $region20
        $region19: #{tpu_custom_call.1} parent=11 // pred_region
          _
        $region20: #{tpu_custom_call.1} parent=11 // pred_fallthru
          _
      $region12: #{tpu_custom_call.1} parent=5 // pred_fallthru
        _
      %p184 = scmp.lt.s32.totalorder %s15, 4
      // Predicated region
      $region21: #{tpu_custom_call.1} parent=5 // pred_check
        %p185 = pneg %p184
      $region22: #{tpu_custom_call.1} parent=5 // pred_check_branch
        %187 = sbr.rel (%p185) target = $region24
      $region23: #{tpu_custom_call.1} parent=5 // pred_region
        // Predicated region
        $region25: #{tpu_custom_call.1} parent=23 // pred_check
          %p188 = pneg %p49
        $region26: #{tpu_custom_call.1} parent=23 // pred_check_branch
          %190 = sbr.rel (%p188) target = $region28
        $region27: #{tpu_custom_call.1} parent=23 // pred_region
          %s191 = sand.u32 %s39, 1
          %s192 = scalar_lea.sflag [#allocation3], %s191
          %s193 = sand.u32 %s39, 1
          %s194 = smul.addr %s193, 4
          %s195 = scalar_lea.vmem [#allocation2], %s194
          %s197 = ssub.s32 64, 64
          %198 = vsyncadd %s192, %s197
          %s199 = smul.addr %s22, 2
          %s200 = sadd.s32 %s23, %s199
          %s201 = smul.addr %s200, 64
          %s202 = scalar_lea.hbm %s0, %s201
          %s204 = sshll.u32 %s195, 4
          %s205 = int_to_ptr.vmem [resolvable:$true] %s204
          %207 = dma.hbm_to_vmem [thread:$0]  %s202, 64, %s205, %s192
        $region28: #{tpu_custom_call.1} parent=23 // pred_fallthru
          _
      $region24: #{tpu_custom_call.1} parent=5 // pred_fallthru
        _
      %p208 = scmp.le.s32.totalorder 1, %s15
      %p209 = scmp.lt.s32.totalorder %s15, 5
      %p210 = pnand %p208, %p209
      %p211 = pneg %p210
      // Predicated region
      $region29: #{tpu_custom_call.1} parent=5 // pred_check
        _
      $region30: #{tpu_custom_call.1} parent=5 // pred_check_branch
        %213 = sbr.rel (%p210) target = $region32
      $region31: #{tpu_custom_call.1} parent=5 // pred_region
        %s214 = ssub.s32 %s15, 1
        %s215 = sand.u32 %s42, 1
        %s216 = scalar_lea.sflag [#allocation3], %s215
        %s217 = sand.u32 %s42, 1
        %s218 = smul.addr %s217, 4
        %s219 = scalar_lea.vmem [#allocation2], %s218
        // Predicated region
        $region33: #{tpu_custom_call.1} parent=31 // pred_check
          %p220 = pneg %p55
        $region34: #{tpu_custom_call.1} parent=31 // pred_check_branch
          %222 = sbr.rel (%p220) target = $region36
        $region35: #{tpu_custom_call.1} parent=31 // pred_region
          %223 = dma.done %s216, 64
        $region36: #{tpu_custom_call.1} parent=31 // pred_fallthru
          _
        // Predicated region
        $region37: #{tpu_custom_call.1} parent=31 // pred_check
          %p224 = pneg %p76
        $region38: #{tpu_custom_call.1} parent=31 // pred_check_branch
          %226 = sbr.rel (%p224) target = $region40
        $region39: #{tpu_custom_call.1} parent=31 // pred_region
          %227 = dma.done [#allocation5], 256
        $region40: #{tpu_custom_call.1} parent=31 // pred_fallthru
          _
        %s228 = sand.u32 %s42, 1
        %s229 = scalar_lea.sflag [#allocation3], %s228
        %s230 = sand.u32 %s42, 1
        %s231 = smul.addr %s230, 4
        %s232 = scalar_lea.vmem [#allocation2], %s231
        %p233 = pneg %p55
        %p234 = pneg %p52
        %p235 = pneg %p76
        %p236 = pneg %p73
        %p237 = pneg %p97
        %p238 = pneg %p94
        %p239 = pneg %p125
        %p240 = pneg %p122
        %s241 = sand.u32 %s112, 1
        %s242 = sand.u32 %s112, 1
        %s243 = smul.addr %s242, 16
        %s244 = scalar_lea.vmem [#allocation6], %s243
        %p245 = pneg %p153
        %p246 = pneg %p150
        %s247 = sand.u32 %s140, 1
        %s248 = sand.u32 %s140, 1
        %s249 = smul.addr %s248, 16
        %s250 = scalar_lea.vmem [#allocation7], %s249
        %v252 = vld [vmem:[%s219] sm:$0xf]
        %v253 = vld [vmem:[#allocation4] sm:$0xf]
        %v254 = vld [vmem:[#allocation4 + $0x4] sm:$0xf]
        %v255 = vld [vmem:[#allocation4 + $0x8] sm:$0xf]
        %v256 = vld [vmem:[#allocation4 + $0xc] sm:$0xf]
        %v261 = vunpack.c.l.b16 %v253
        %v262 = vunpack.c.l.b16 %v254
        %v263 = vunpack.c.l.b16 %v255
        %v264 = vunpack.c.l.b16 %v256
        %v265 = vpack.c.b16 %v262, %v261
        %v266 = vpack.c.b16 %v264, %v263
        %vm269 = vcmask 261120
        %v271 = vsel %vm269, %v252, 0
        %273 = vmatprep.subr.bf16.mxu0 0
        %274 = vmatpush1.bf16.msra.mxu0 0
        %275 = vmatprep.subr.bf16.mxu0 0
        %276 = vmatpush1.bf16.msra.mxu0 0
        %277 = vmatprep.subr.bf16.mxu0 0
        %278 = vmatpush1.bf16.msra.mxu0 0
        %279 = vmatprep.subr.bf16.mxu0 0
        %280 = vmatpush1.bf16.msra.mxu0 0
        %281 = vmatprep.subr.bf16.mxu0 0
        %282 = vmatpush1.bf16.msra.mxu0 0
        %283 = vmatprep.subr.bf16.mxu0 0
        %284 = vmatpush1.bf16.msra.mxu0 0
        %285 = vmatprep.subr.bf16.mxu0 0
        %286 = vmatpush1.bf16.msra.mxu0 %v266
        %287 = vmatprep.subr.bf16.mxu0 0
        %288 = vmatpush1.bf16.msra.mxu0 %v265
        %289 = vmatprep.subr.bf16.mxu0 0
        %290 = vmatpush2.bf16.msra.mxu0 0
        %291 = vmatprep.subr.bf16.mxu0 0
        %292 = vmatpush2.bf16.msra.mxu0 0
        %293 = vmatprep.subr.bf16.mxu0 0
        %294 = vmatpush2.bf16.msra.mxu0 0
        %295 = vmatprep.subr.bf16.mxu0 0
        %296 = vmatpush2.bf16.msra.mxu0 0
        %297 = vmatprep.subr.bf16.mxu0 0
        %298 = vmatpush2.bf16.msra.mxu0 0
        %299 = vmatprep.subr.bf16.mxu0 0
        %300 = vmatpush2.bf16.msra.mxu0 0
        %301 = vmatprep.subr.bf16.mxu0 0
        %302 = vmatpush2.bf16.msra.mxu0 0
        %303 = vmatprep.subr.bf16.mxu0 0
        %304 = vmatpush2.bf16.msra.mxu0 0
        %305 = vmatprep.mubr.bf16.mxu0 0
        %306 = vmatmul.mubr.bf16.gmra.mxu0 %v271
        %v307 = vpop.f32.mrf.mxu0
        %v308 = vadd.f32 0.0, %v307
        %v309 = vpop.f32.mrf.mxu0
        %v310 = vpop.f32.mrf.mxu0
        %v311 = vpop.f32.mrf.mxu0
        %312 = vdwg.mxu0
        %v313 = vld [vmem:[%s2] sm:$0x1]
        %v315 = vlaneseq
        %v316 = vshrl.u32 %v315, 7
        %v317 = vsub.s32 0, %v316
        %v318 = vrot.slane %v313, %v317
        %319 = vrot.lane.b32.xlu0 %v318, 32
        %v320 = vpop.permute.xlu0 %319
        %v322 = vadd.f32 %v308, %v320
        %324 = vrot.lane.b32.xlu0 %v308, 120
        %v325 = vpop.permute.xlu0 %324
        %327 = vrot.lane.b32.xlu0 %v308, 112
        %v328 = vpop.permute.xlu0 %327
        %330 = vrot.lane.b32.xlu0 %v308, 104
        %v331 = vpop.permute.xlu0 %330
        %v333 = vcombine.low %v308, %v328
        %v334 = vcombine.high %v308, %v328
        %v336 = vunpack.c.l.s4 1983009808
        %v337 = vunpack.c.0.s8 %v336
        %v338 = vlaneseq
        %v339 = vshrl.u32 %v338, 7
        %v340 = vsub.s32 %v337, %v339
        %v341 = vrot.slane %v333, %v340
        %v343 = vunpack.c.l.s4 1983009808
        %v344 = vunpack.c.0.s8 %v343
        %v345 = vlaneseq
        %v346 = vshrl.u32 %v345, 7
        %v347 = vsub.s32 %v344, %v346
        %v348 = vrot.slane %v334, %v347
        %v349 = vcombine.low %v325, %v331
        %v350 = vcombine.high %v325, %v331
        %v352 = vunpack.c.l.s4 1983009808
        %v353 = vunpack.c.0.s8 %v352
        %v354 = vlaneseq
        %v355 = vshrl.u32 %v354, 7
        %v356 = vsub.s32 %v353, %v355
        %v357 = vrot.slane %v349, %v356
        %v359 = vunpack.c.l.s4 1983009808
        %v360 = vunpack.c.0.s8 %v359
        %v361 = vlaneseq
        %v362 = vshrl.u32 %v361, 7
        %v363 = vsub.s32 %v360, %v362
        %v364 = vrot.slane %v350, %v363
        %v365 = vcombine.low %v341, %v357
        %v366 = vcombine.high %v341, %v357
        %v368 = vunpack.c.l.s4 1934713408
        %v369 = vunpack.c.0.s8 %v368
        %v370 = vlaneseq
        %v371 = vshrl.u32 %v370, 7
        %v372 = vsub.s32 %v369, %v371
        %v373 = vrot.slane %v365, %v372
        %v375 = vunpack.c.l.s4 1934713408
        %v376 = vunpack.c.0.s8 %v375
        %v377 = vlaneseq
        %v378 = vshrl.u32 %v377, 7
        %v379 = vsub.s32 %v376, %v378
        %v380 = vrot.slane %v366, %v379
        %v381 = vcombine.low %v348, %v364
        %v382 = vcombine.high %v348, %v364
        %v384 = vunpack.c.l.s4 1934713408
        %v385 = vunpack.c.0.s8 %v384
        %v386 = vlaneseq
        %v387 = vshrl.u32 %v386, 7
        %v388 = vsub.s32 %v385, %v387
        %v389 = vrot.slane %v381, %v388
        %v391 = vunpack.c.l.s4 1934713408
        %v392 = vunpack.c.0.s8 %v391
        %v393 = vlaneseq
        %v394 = vshrl.u32 %v393, 7
        %v395 = vsub.s32 %v392, %v394
        %v396 = vrot.slane %v382, %v395
        %v397 = vcombine.high %v373, 0.0
        %v398 = vcombine.high %v380, 0.0
        %v399 = vcombine.high %v389, 0.0
        %v400 = vcombine.high %v396, 0.0
        %v401 = vcombine.low %v373, %v380
        %v403 = vunpack.c.l.s4 1983009808
        %v404 = vunpack.c.0.s8 %v403
        %v405 = vlaneseq
        %v406 = vshrl.u32 %v405, 7
        %v407 = vsub.s32 %v404, %v406
        %v408 = vrot.slane %v401, %v407
        %v409 = vcombine.low %v397, %v398
        %v411 = vunpack.c.l.s4 1983009808
        %v412 = vunpack.c.0.s8 %v411
        %v413 = vlaneseq
        %v414 = vshrl.u32 %v413, 7
        %v415 = vsub.s32 %v412, %v414
        %v416 = vrot.slane %v409, %v415
        %v417 = vcombine.low %v389, %v396
        %v419 = vunpack.c.l.s4 1983009808
        %v420 = vunpack.c.0.s8 %v419
        %v421 = vlaneseq
        %v422 = vshrl.u32 %v421, 7
        %v423 = vsub.s32 %v420, %v422
        %v424 = vrot.slane %v417, %v423
        %v425 = vcombine.low %v399, %v400
        %v427 = vunpack.c.l.s4 1983009808
        %v428 = vunpack.c.0.s8 %v427
        %v429 = vlaneseq
        %v430 = vshrl.u32 %v429, 7
        %v431 = vsub.s32 %v428, %v430
        %v432 = vrot.slane %v425, %v431
        %v433 = vcombine.low %v408, %v416
        %v434 = vcombine.high %v408, %v416
        %v436 = vunpack.c.l.s4 1934713408
        %v437 = vunpack.c.0.s8 %v436
        %v438 = vlaneseq
        %v439 = vshrl.u32 %v438, 7
        %v440 = vsub.s32 %v437, %v439
        %v441 = vrot.slane %v433, %v440
        %v443 = vunpack.c.l.s4 1934713408
        %v444 = vunpack.c.0.s8 %v443
        %v445 = vlaneseq
        %v446 = vshrl.u32 %v445, 7
        %v447 = vsub.s32 %v444, %v446
        %v448 = vrot.slane %v434, %v447
        %v449 = vcombine.low %v424, %v432
        %v450 = vcombine.high %v424, %v432
        %v452 = vunpack.c.l.s4 1934713408
        %v453 = vunpack.c.0.s8 %v452
        %v454 = vlaneseq
        %v455 = vshrl.u32 %v454, 7
        %v456 = vsub.s32 %v453, %v455
        %v457 = vrot.slane %v449, %v456
        %v459 = vunpack.c.l.s4 1934713408
        %v460 = vunpack.c.0.s8 %v459
        %v461 = vlaneseq
        %v462 = vshrl.u32 %v461, 7
        %v463 = vsub.s32 %v460, %v462
        %v464 = vrot.slane %v450, %v463
        %v465 = vcombine.low %v441, %v457
        %v466 = vcombine.high %v441, %v457
        %v467 = vcombine.low %v448, %v464
        %v468 = vcombine.high %v448, %v464
        %470 = vrot.lane.b32.xlu0 %v322, 120
        %v471 = vpop.permute.xlu0 %470
        %472 = vrot.lane.b32.xlu0 %v322, 112
        %v473 = vpop.permute.xlu0 %472
        %474 = vrot.lane.b32.xlu0 %v322, 104
        %v475 = vpop.permute.xlu0 %474
        %476 = vrot.lane.b32.xlu0 %v322, 96
        %v477 = vpop.permute.xlu0 %476
        %478 = vrot.lane.b32.xlu0 %v471, 96
        %v479 = vpop.permute.xlu0 %478
        %480 = vrot.lane.b32.xlu0 %v473, 96
        %v481 = vpop.permute.xlu0 %480
        %482 = vrot.lane.b32.xlu0 %v475, 96
        %v483 = vpop.permute.xlu0 %482
        %v488 = vcombine.low %v477, %v481
        %v489 = vcombine.high %v477, %v481
        %v491 = vunpack.c.l.s4 1983009808
        %v492 = vunpack.c.0.s8 %v491
        %v493 = vlaneseq
        %v494 = vshrl.u32 %v493, 7
        %v495 = vsub.s32 %v492, %v494
        %v496 = vrot.slane %v488, %v495
        %v498 = vunpack.c.l.s4 1983009808
        %v499 = vunpack.c.0.s8 %v498
        %v500 = vlaneseq
        %v501 = vshrl.u32 %v500, 7
        %v502 = vsub.s32 %v499, %v501
        %v503 = vrot.slane %v489, %v502
        %v504 = vcombine.low %v479, %v483
        %v505 = vcombine.high %v479, %v483
        %v507 = vunpack.c.l.s4 1983009808
        %v508 = vunpack.c.0.s8 %v507
        %v509 = vlaneseq
        %v510 = vshrl.u32 %v509, 7
        %v511 = vsub.s32 %v508, %v510
        %v512 = vrot.slane %v504, %v511
        %v514 = vunpack.c.l.s4 1983009808
        %v515 = vunpack.c.0.s8 %v514
        %v516 = vlaneseq
        %v517 = vshrl.u32 %v516, 7
        %v518 = vsub.s32 %v515, %v517
        %v519 = vrot.slane %v505, %v518
        %v520 = vcombine.low %v496, %v512
        %v521 = vcombine.high %v496, %v512
        %v523 = vunpack.c.l.s4 1934713408
        %v524 = vunpack.c.0.s8 %v523
        %v525 = vlaneseq
        %v526 = vshrl.u32 %v525, 7
        %v527 = vsub.s32 %v524, %v526
        %v528 = vrot.slane %v520, %v527
        %v530 = vunpack.c.l.s4 1934713408
        %v531 = vunpack.c.0.s8 %v530
        %v532 = vlaneseq
        %v533 = vshrl.u32 %v532, 7
        %v534 = vsub.s32 %v531, %v533
        %v535 = vrot.slane %v521, %v534
        %v536 = vcombine.low %v503, %v519
        %v537 = vcombine.high %v503, %v519
        %v539 = vunpack.c.l.s4 1934713408
        %v540 = vunpack.c.0.s8 %v539
        %v541 = vlaneseq
        %v542 = vshrl.u32 %v541, 7
        %v543 = vsub.s32 %v540, %v542
        %v544 = vrot.slane %v536, %v543
        %v546 = vunpack.c.l.s4 1934713408
        %v547 = vunpack.c.0.s8 %v546
        %v548 = vlaneseq
        %v549 = vshrl.u32 %v548, 7
        %v550 = vsub.s32 %v547, %v549
        %v551 = vrot.slane %v537, %v550
        %v552 = vcombine.high %v528, 0.0
        %v553 = vcombine.high %v535, 0.0
        %v554 = vcombine.high %v544, 0.0
        %v555 = vcombine.high %v551, 0.0
        %v556 = vcombine.low %v528, %v535
        %v558 = vunpack.c.l.s4 1983009808
        %v559 = vunpack.c.0.s8 %v558
        %v560 = vlaneseq
        %v561 = vshrl.u32 %v560, 7
        %v562 = vsub.s32 %v559, %v561
        %v563 = vrot.slane %v556, %v562
        %v564 = vcombine.low %v552, %v553
        %v566 = vunpack.c.l.s4 1983009808
        %v567 = vunpack.c.0.s8 %v566
        %v568 = vlaneseq
        %v569 = vshrl.u32 %v568, 7
        %v570 = vsub.s32 %v567, %v569
        %v571 = vrot.slane %v564, %v570
        %v572 = vcombine.low %v544, %v551
        %v574 = vunpack.c.l.s4 1983009808
        %v575 = vunpack.c.0.s8 %v574
        %v576 = vlaneseq
        %v577 = vshrl.u32 %v576, 7
        %v578 = vsub.s32 %v575, %v577
        %v579 = vrot.slane %v572, %v578
        %v580 = vcombine.low %v554, %v555
        %v582 = vunpack.c.l.s4 1983009808
        %v583 = vunpack.c.0.s8 %v582
        %v584 = vlaneseq
        %v585 = vshrl.u32 %v584, 7
        %v586 = vsub.s32 %v583, %v585
        %v587 = vrot.slane %v580, %v586
        %v588 = vcombine.low %v563, %v571
        %v589 = vcombine.high %v563, %v571
        %v591 = vunpack.c.l.s4 1934713408
        %v592 = vunpack.c.0.s8 %v591
        %v593 = vlaneseq
        %v594 = vshrl.u32 %v593, 7
        %v595 = vsub.s32 %v592, %v594
        %v596 = vrot.slane %v588, %v595
        %v598 = vunpack.c.l.s4 1934713408
        %v599 = vunpack.c.0.s8 %v598
        %v600 = vlaneseq
        %v601 = vshrl.u32 %v600, 7
        %v602 = vsub.s32 %v599, %v601
        %v603 = vrot.slane %v589, %v602
        %v604 = vcombine.low %v579, %v587
        %v605 = vcombine.high %v579, %v587
        %v607 = vunpack.c.l.s4 1934713408
        %v608 = vunpack.c.0.s8 %v607
        %v609 = vlaneseq
        %v610 = vshrl.u32 %v609, 7
        %v611 = vsub.s32 %v608, %v610
        %v612 = vrot.slane %v604, %v611
        %v614 = vunpack.c.l.s4 1934713408
        %v615 = vunpack.c.0.s8 %v614
        %v616 = vlaneseq
        %v617 = vshrl.u32 %v616, 7
        %v618 = vsub.s32 %v615, %v617
        %v619 = vrot.slane %v605, %v618
        %v620 = vcombine.low %v596, %v612
        %v621 = vcombine.high %v596, %v612
        %v622 = vcombine.low %v603, %v619
        %v623 = vcombine.high %v603, %v619
        %v624 = vpack.c.bf16 %v465, %v465
        %v625 = vpack.c.bf16 %v466, %v466
        %v626 = vpack.c.bf16 %v467, %v467
        %v627 = vpack.c.bf16 %v468, %v468
        %vm628 = vcmask 60416
        %629 = vst.msk [vmem:[%s244] sm:$0xf] %vm628, %v624
        %630 = vst.msk [vmem:[%s244 + $0x4] sm:$0xf] %vm628, %v625
        %631 = vst.msk [vmem:[%s244 + $0x8] sm:$0xf] %vm628, %v626
        %632 = vst.msk [vmem:[%s244 + $0xc] sm:$0xf] %vm628, %v627
        %v633 = vpack.c.bf16 %v620, %v620
        %v634 = vpack.c.bf16 %v621, %v621
        %v635 = vpack.c.bf16 %v622, %v622
        %v636 = vpack.c.bf16 %v623, %v623
        %637 = vst.msk [vmem:[%s250] sm:$0xf] %vm628, %v633
        %638 = vst.msk [vmem:[%s250 + $0x4] sm:$0xf] %vm628, %v634
        %639 = vst.msk [vmem:[%s250 + $0x8] sm:$0xf] %vm628, %v635
        %640 = vst.msk [vmem:[%s250 + $0xc] sm:$0xf] %vm628, %v636
        %s641 = sand.u32 %s112, 1
        %s642 = sand.u32 %s112, 1
        %s643 = smul.addr %s642, 16
        %s644 = scalar_lea.vmem [#allocation6], %s643
        %s645 = sand.u32 %s140, 1
        %s646 = sand.u32 %s140, 1
        %s647 = smul.addr %s646, 16
        %s648 = scalar_lea.vmem [#allocation7], %s647
        // Predicated region
        $region41: #{tpu_custom_call.1} parent=31 // pred_check
          %p649 = pneg %p122
        $region42: #{tpu_custom_call.1} parent=31 // pred_check_branch
          %651 = sbr.rel (%p649) target = $region44
        $region43: #{tpu_custom_call.1} parent=31 // pred_region
          %s652 = smul.addr %s24, 8
          %s653 = sadd.s32 %s25, %s652
          %s654 = smul.addr %s653, 4
          %s655 = scalar_lea.vmem %s3, %s654
          // Predicated region
          $region45: #{tpu_custom_call.1} parent=43 // pred_check
            _
          $region46: #{tpu_custom_call.1} parent=43 // pred_check_branch
            %657 = sbr.rel (0) target = $region48
          $region47: #{tpu_custom_call.1} parent=43 // pred_region
            // Predicated region
            $region49: #{tpu_custom_call.1} parent=47 // pred_check
              _
            $region50: #{tpu_custom_call.1} parent=47 // pred_check_branch
              %659 = sbr.rel target = $region52
            $region51: #{tpu_custom_call.1} parent=47 // pred_region
              // Predicated region
              $region64: #{tpu_custom_call.1} parent=51 // pred_check
                _
              $region65: #{tpu_custom_call.1} parent=51 // pred_check_branch
                %681 = sbr.rel (0) target = $region67
              $region66: #{tpu_custom_call.1} parent=51 // pred_region
                loop: start=0, step=1, limit=1
                $region68: #{tpu_custom_call.1} parent=66 // loop_pre_header
                  _
                $region69: #{tpu_custom_call.1} parent=66 // loop_header
                  %s683 = sphi 0, %s687
                  %p684 = scmp.ge.s32.totalorder %s683, 1
                  %s688 = sphi %s644, %s644
                  %s689 = sphi %s655, %s655
                $region70: #{tpu_custom_call.1} parent=66 // loop_header_branch
                  %686 = sbr.rel (%p684) target = $region74
                $region71: #{tpu_custom_call.1} parent=66 // loop_body
                  _
                $region72: #{tpu_custom_call.1} parent=66 // loop_footer
                  %s687 = sadd.s32 1, %s683
                $region73: #{tpu_custom_call.1} parent=66 // loop_footer_branch
                  %682 = sbr.rel target = $region69
                $region74: #{tpu_custom_call.1} parent=66 // loop_exit
                  _
                %s691 = ssub.s32 16, 1
                loop: start=0, step=1, limit=1
                $region75: #{tpu_custom_call.1} parent=66 // loop_pre_header
                  _
                $region76: #{tpu_custom_call.1} parent=66 // loop_header
                  %s693 = sphi 0, %s697
                  %p694 = scmp.ge.s32.totalorder %s693, 1
                  %s698 = sphi %s644, %s644
                  %s699 = sphi %s655, %s655
                $region77: #{tpu_custom_call.1} parent=66 // loop_header_branch
                  %696 = sbr.rel (%p694) target = $region81
                $region78: #{tpu_custom_call.1} parent=66 // loop_body
                  %v700 = vld [vmem:[%s698] sm:%s691]
                  %701 = vst [vmem:[%s699] sm:%s691] %v700
                  %v702 = vld [vmem:[%s698 + $0x4] sm:%s691]
                  %703 = vst [vmem:[%s699 + $0x8] sm:%s691] %v702
                  %v704 = vld [vmem:[%s698 + $0x8] sm:%s691]
                  %705 = vst [vmem:[%s699 + $0x10] sm:%s691] %v704
                  %v706 = vld [vmem:[%s698 + $0xc] sm:%s691]
                  %707 = vst [vmem:[%s699 + $0x18] sm:%s691] %v706
                $region79: #{tpu_custom_call.1} parent=66 // loop_footer
                  %s697 = sadd.s32 1, %s693
                $region80: #{tpu_custom_call.1} parent=66 // loop_footer_branch
                  %692 = sbr.rel target = $region76
                $region81: #{tpu_custom_call.1} parent=66 // loop_exit
                  _
              $region67: #{tpu_custom_call.1} parent=51 // pred_fallthru
                _
            $region52: #{tpu_custom_call.1} parent=47 // pred_fallthru
              _
            // Predicated region
            $region53: #{tpu_custom_call.1} parent=47 // pred_check
              _
            $region54: #{tpu_custom_call.1} parent=47 // pred_check_branch
              %661 = sbr.rel (0) target = $region56
            $region55: #{tpu_custom_call.1} parent=47 // pred_region
              %s663 = ssub.s32 16, 1
              loop: start=0, step=1, limit=1
              $region57: #{tpu_custom_call.1} parent=55 // loop_pre_header
                _
              $region58: #{tpu_custom_call.1} parent=55 // loop_header
                %s665 = sphi 0, %s669
                %p666 = scmp.ge.s32.totalorder %s665, 1
                %s670 = sphi %s644, %s644
                %s671 = sphi %s655, %s655
              $region59: #{tpu_custom_call.1} parent=55 // loop_header_branch
                %668 = sbr.rel (%p666) target = $region63
              $region60: #{tpu_custom_call.1} parent=55 // loop_body
                %v672 = vld [vmem:[%s670] sm:%s663]
                %673 = vst [vmem:[%s671] sm:%s663] %v672
                %v674 = vld [vmem:[%s670 + $0x4] sm:%s663]
                %675 = vst [vmem:[%s671 + $0x8] sm:%s663] %v674
                %v676 = vld [vmem:[%s670 + $0x8] sm:%s663]
                %677 = vst [vmem:[%s671 + $0x10] sm:%s663] %v676
                %v678 = vld [vmem:[%s670 + $0xc] sm:%s663]
                %679 = vst [vmem:[%s671 + $0x18] sm:%s663] %v678
              $region61: #{tpu_custom_call.1} parent=55 // loop_footer
                %s669 = sadd.s32 1, %s665
              $region62: #{tpu_custom_call.1} parent=55 // loop_footer_branch
                %664 = sbr.rel target = $region58
              $region63: #{tpu_custom_call.1} parent=55 // loop_exit
                _
            $region56: #{tpu_custom_call.1} parent=47 // pred_fallthru
              _
          $region48: #{tpu_custom_call.1} parent=43 // pred_fallthru
            _
          %708 = vnop
        $region44: #{tpu_custom_call.1} parent=31 // pred_fallthru
          _
        // Predicated region
        $region82: #{tpu_custom_call.1} parent=31 // pred_check
          %p709 = pneg %p150
        $region83: #{tpu_custom_call.1} parent=31 // pred_check_branch
          %711 = sbr.rel (%p709) target = $region85
        $region84: #{tpu_custom_call.1} parent=31 // pred_region
          %s712 = smul.addr %s24, 8
          %s713 = sadd.s32 %s25, %s712
          %s714 = smul.addr %s713, 4
          %s715 = scalar_lea.vmem %s4, %s714
          // Predicated region
          $region86: #{tpu_custom_call.1} parent=84 // pred_check
            _
          $region87: #{tpu_custom_call.1} parent=84 // pred_check_branch
            %717 = sbr.rel (0) target = $region89
          $region88: #{tpu_custom_call.1} parent=84 // pred_region
            // Predicated region
            $region90: #{tpu_custom_call.1} parent=88 // pred_check
              _
            $region91: #{tpu_custom_call.1} parent=88 // pred_check_branch
              %719 = sbr.rel target = $region93
            $region92: #{tpu_custom_call.1} parent=88 // pred_region
              // Predicated region
              $region105: #{tpu_custom_call.1} parent=92 // pred_check
                _
              $region106: #{tpu_custom_call.1} parent=92 // pred_check_branch
                %741 = sbr.rel (0) target = $region108
              $region107: #{tpu_custom_call.1} parent=92 // pred_region
                loop: start=0, step=1, limit=1
                $region109: #{tpu_custom_call.1} parent=107 // loop_pre_header
                  _
                $region110: #{tpu_custom_call.1} parent=107 // loop_header
                  %s743 = sphi 0, %s747
                  %p744 = scmp.ge.s32.totalorder %s743, 1
                  %s748 = sphi %s648, %s648
                  %s749 = sphi %s715, %s715
                $region111: #{tpu_custom_call.1} parent=107 // loop_header_branch
                  %746 = sbr.rel (%p744) target = $region115
                $region112: #{tpu_custom_call.1} parent=107 // loop_body
                  _
                $region113: #{tpu_custom_call.1} parent=107 // loop_footer
                  %s747 = sadd.s32 1, %s743
                $region114: #{tpu_custom_call.1} parent=107 // loop_footer_branch
                  %742 = sbr.rel target = $region110
                $region115: #{tpu_custom_call.1} parent=107 // loop_exit
                  _
                %s751 = ssub.s32 16, 1
                loop: start=0, step=1, limit=1
                $region116: #{tpu_custom_call.1} parent=107 // loop_pre_header
                  _
                $region117: #{tpu_custom_call.1} parent=107 // loop_header
                  %s753 = sphi 0, %s757
                  %p754 = scmp.ge.s32.totalorder %s753, 1
                  %s758 = sphi %s648, %s648
                  %s759 = sphi %s715, %s715
                $region118: #{tpu_custom_call.1} parent=107 // loop_header_branch
                  %756 = sbr.rel (%p754) target = $region122
                $region119: #{tpu_custom_call.1} parent=107 // loop_body
                  %v760 = vld [vmem:[%s758] sm:%s751]
                  %761 = vst [vmem:[%s759] sm:%s751] %v760
                  %v762 = vld [vmem:[%s758 + $0x4] sm:%s751]
                  %763 = vst [vmem:[%s759 + $0x8] sm:%s751] %v762
                  %v764 = vld [vmem:[%s758 + $0x8] sm:%s751]
                  %765 = vst [vmem:[%s759 + $0x10] sm:%s751] %v764
                  %v766 = vld [vmem:[%s758 + $0xc] sm:%s751]
                  %767 = vst [vmem:[%s759 + $0x18] sm:%s751] %v766
                $region120: #{tpu_custom_call.1} parent=107 // loop_footer
                  %s757 = sadd.s32 1, %s753
                $region121: #{tpu_custom_call.1} parent=107 // loop_footer_branch
                  %752 = sbr.rel target = $region117
                $region122: #{tpu_custom_call.1} parent=107 // loop_exit
                  _
              $region108: #{tpu_custom_call.1} parent=92 // pred_fallthru
                _
            $region93: #{tpu_custom_call.1} parent=88 // pred_fallthru
              _
            // Predicated region
            $region94: #{tpu_custom_call.1} parent=88 // pred_check
              _
            $region95: #{tpu_custom_call.1} parent=88 // pred_check_branch
              %721 = sbr.rel (0) target = $region97
            $region96: #{tpu_custom_call.1} parent=88 // pred_region
              %s723 = ssub.s32 16, 1
              loop: start=0, step=1, limit=1
              $region98: #{tpu_custom_call.1} parent=96 // loop_pre_header
                _
              $region99: #{tpu_custom_call.1} parent=96 // loop_header
                %s725 = sphi 0, %s729
                %p726 = scmp.ge.s32.totalorder %s725, 1
                %s730 = sphi %s648, %s648
                %s731 = sphi %s715, %s715
              $region100: #{tpu_custom_call.1} parent=96 // loop_header_branch
                %728 = sbr.rel (%p726) target = $region104
              $region101: #{tpu_custom_call.1} parent=96 // loop_body
                %v732 = vld [vmem:[%s730] sm:%s723]
                %733 = vst [vmem:[%s731] sm:%s723] %v732
                %v734 = vld [vmem:[%s730 + $0x4] sm:%s723]
                %735 = vst [vmem:[%s731 + $0x8] sm:%s723] %v734
                %v736 = vld [vmem:[%s730 + $0x8] sm:%s723]
                %737 = vst [vmem:[%s731 + $0x10] sm:%s723] %v736
                %v738 = vld [vmem:[%s730 + $0xc] sm:%s723]
                %739 = vst [vmem:[%s731 + $0x18] sm:%s723] %v738
              $region102: #{tpu_custom_call.1} parent=96 // loop_footer
                %s729 = sadd.s32 1, %s725
              $region103: #{tpu_custom_call.1} parent=96 // loop_footer_branch
                %724 = sbr.rel target = $region99
              $region104: #{tpu_custom_call.1} parent=96 // loop_exit
                _
            $region97: #{tpu_custom_call.1} parent=88 // pred_fallthru
              _
          $region89: #{tpu_custom_call.1} parent=84 // pred_fallthru
            _
          %768 = vnop
        $region85: #{tpu_custom_call.1} parent=31 // pred_fallthru
          _
      $region32: #{tpu_custom_call.1} parent=5 // pred_fallthru
        _
      %p769 = scmp.le.s32.totalorder 2, %s15
      // Predicated region
      $region123: #{tpu_custom_call.1} parent=5 // pred_check
        %p770 = pneg %p769
      $region124: #{tpu_custom_call.1} parent=5 // pred_check_branch
        %772 = sbr.rel (%p770) target = $region126
      $region125: #{tpu_custom_call.1} parent=5 // pred_region
        %s773 = ssub.s32 %s15, 2
        // Predicated region
        $region127: #{tpu_custom_call.1} parent=125 // pred_check
          %p774 = pneg %p128
        $region128: #{tpu_custom_call.1} parent=125 // pred_check_branch
          %776 = sbr.rel (%p774) target = $region130
        $region129: #{tpu_custom_call.1} parent=125 // pred_region
          %s777 = sand.u32 %s113, 1
          %s778 = sand.u32 %s113, 1
          %s779 = smul.addr %s778, 16
          %s780 = scalar_lea.vmem [#allocation6], %s779
        $region130: #{tpu_custom_call.1} parent=125 // pred_fallthru
          _
        // Predicated region
        $region131: #{tpu_custom_call.1} parent=125 // pred_check
          %p781 = pneg %p156
        $region132: #{tpu_custom_call.1} parent=125 // pred_check_branch
          %783 = sbr.rel (%p781) target = $region134
        $region133: #{tpu_custom_call.1} parent=125 // pred_region
          %s784 = sand.u32 %s141, 1
          %s785 = sand.u32 %s141, 1
          %s786 = smul.addr %s785, 16
          %s787 = scalar_lea.vmem [#allocation7], %s786
        $region134: #{tpu_custom_call.1} parent=125 // pred_fallthru
          _
      $region126: #{tpu_custom_call.1} parent=5 // pred_fallthru
        _
    $region6: #{tpu_custom_call.1} parent=1 // loop_footer
      %s19 = sadd.s32 1, %s15
    $region7: #{tpu_custom_call.1} parent=1 // loop_footer_branch
      %14 = sbr.rel target = $region3
    $region8: #{tpu_custom_call.1} parent=1 // loop_exit
      _
    %788 = vsyncpa [#allocation3], 1
    %s789 = scalar_lea.sflag [#allocation3], 1
    %790 = vsyncpa %s789, 1
    %791 = vsyncpa [#allocation5], 1

</llo_original>
